<compile_context>
chip_gen: v7x
topology: tpu7x:2x2x1
jax: 0.10.0
libtpu: 0.0.40
codegen_flags: <defaults>
</compile_context>

<pallas_src>
import functools

import jax
import jax.numpy as jnp
from jax import lax
from jax.experimental import pallas as pl
from jax.experimental.pallas import tpu as pltpu

LN_EPS = 1e-5  # nn.LayerNorm default


def _round_up(x, m):
    return ((x + m - 1) // m) * m


# --------------------------------------------------------------------------- #
# Kernel
# --------------------------------------------------------------------------- #
def _seq_embed_kernel(idx_ref, bio_ref, w_ref, cgb_ref, out_ref, *,
                      v_pad, bd, grp_n, d):
    """One grid step: tile_r rows, each row carrying grp_n tokens (lane-dense).

    idx_ref : (tile_r, grp_n)                 int32  aa indices, grp_n tokens/row
    bio_ref : (tile_r, grp_n*bd)              f32    biochem features, grouped
    w_ref   : (grp_n*v_pad + grp_n*bd, grp_n*d) f32  block-diagonal folded weights
    cgb_ref : (3, grp_n*d)                    f32    rows: folded bias c, gamma, beta
    out_ref : (tile_r, grp_n*d)                      lane-dense output block
    """
    tile_r = idx_ref.shape[0]
    k_oh = grp_n * v_pad            # one-hot rows of the folded weight
    k_bio = grp_n * bd              # biochem rows of the folded weight
    gd = grp_n * d                  # lane-dense row width

    # ---- combined per-group one-hot: lane (g*v_pad + v) is hot iff idx[:, g]==v
    lane = lax.broadcasted_iota(jnp.int32, (tile_r, k_oh), 1)
    idx = idx_ref[...]
    hot = None
    for g in range(grp_n):
        t = lane == (idx[:, g:g + 1] + g * v_pad)
        hot = t if hot is None else (hot | t)
    one_hot = hot.astype(jnp.float32)

    # ---- fused = emb[idx] @ wf1 + (bio @ wb + bb) @ wf2 + bf, folded into two
    #      block-diagonal MXU matmuls (each token's group -> its d-lane slot).
    fused = (jnp.dot(one_hot, w_ref[0:k_oh, :],
                     preferred_element_type=jnp.float32)
             + jnp.dot(bio_ref[...], w_ref[k_oh:k_oh + k_bio, :],
                       preferred_element_type=jnp.float32)
             + cgb_ref[0:1, :])

    # dropout: eval-mode identity (p=0.1 is only active in training)

    # ---- per-token LayerNorm over each d-lane group; the per-group stats are
    #      broadcast back to the full row so the finalize + store stay lane-dense.
    lane_o = lax.broadcasted_iota(jnp.int32, (1, gd), 1)
    mean_w = var_w = None
    for g in range(grp_n):
        f_g = fused[:, g * d:(g + 1) * d]
        m_g = jnp.mean(f_g, axis=-1, keepdims=True)
        c_g = f_g - m_g
        v_g = jnp.mean(c_g * c_g, axis=-1, keepdims=True)
        if g == 0:
            mean_w, var_w = m_g, v_g
        else:
            sel = lane_o >= g * d
            mean_w = jnp.where(sel, m_g, mean_w)
            var_w = jnp.where(sel, v_g, var_w)

    inv = lax.rsqrt(var_w + LN_EPS)
    y = (fused - mean_w) * inv * cgb_ref[1:2, :] + cgb_ref[2:3, :]
    out_ref[...] = y.astype(out_ref.dtype)


# --------------------------------------------------------------------------- #
# Offline parameter folding
# --------------------------------------------------------------------------- #
def fold_params(params):
    """One-time folding of embedding -> biochem_proj -> fusion_layer into
    block-diagonal matrices (one d-lane slot per grouped token)."""
    hp = lax.Precision.HIGHEST
    emb, wb, bb = params["emb_table"], params["wb"], params["bb"]
    wf1, wf2, bf = params["wf1"], params["wf2"], params["bf"]
    V, D = emb.shape
    Bd = wb.shape[0]
    V_pad = _round_up(V, 8)
    G = 128 // D if (D < 128 and 128 % D == 0) else 1   # tokens per lane-dense row

    A = jnp.dot(emb, wf1, precision=hp)            # (V, D):  one_hot @ A == emb[idx] @ wf1
    Bm = jnp.dot(wb, wf2, precision=hp)            # (Bd, D): bio @ Bm == (bio @ wb) @ wf2
    c = jnp.dot(bb, wf2, precision=hp) + bf        # (1, D):  folded biases

    A_bd = jnp.zeros((G * V_pad, G * D), jnp.float32)
    B_bd = jnp.zeros((G * Bd, G * D), jnp.float32)
    for g in range(G):
        A_bd = A_bd.at[g * V_pad:g * V_pad + V, g * D:(g + 1) * D].set(A)
        B_bd = B_bd.at[g * Bd:(g + 1) * Bd, g * D:(g + 1) * D].set(Bm)
    w_packed = jnp.concatenate([A_bd, B_bd], axis=0)          # (G*V_pad + G*Bd, G*D)

    cgb = jnp.concatenate([jnp.tile(c, (1, G)),
                           jnp.tile(params["gamma"], (1, G)),
                           jnp.tile(params["beta"], (1, G))], axis=0)   # (3, G*D)

    return dict(w_packed=w_packed, cgb=cgb, v_pad=V_pad, bd=Bd, dim=D, groups=G)


# --------------------------------------------------------------------------- #
# Wrapper
# --------------------------------------------------------------------------- #
def sequence_embedding(aa_indices, biochem_features, folded, *,
                       tile_tokens=8192, out_dtype=jnp.float32):
    """aa_indices: (B, S) int; biochem_features: (B, S, biochem_dim) f32."""
    B, S = aa_indices.shape
    D, Bd, G = folded["dim"], folded["bd"], folded["groups"]
    N = B * S

    # Group G consecutive tokens per row via free row-major reshapes (no pad/copy
    # passes on the hot path).  Tiny inputs get a negligible pad so the single
    # block stays 8-row aligned.
    idx_flat = aa_indices.reshape(N).astype(jnp.int32)
    bio_flat = biochem_features.reshape(N, Bd).astype(jnp.float32)
    tok_pad = (-N) % G
    if tok_pad:
        idx_flat = jnp.pad(idx_flat, (0, tok_pad))
        bio_flat = jnp.pad(bio_flat, ((0, tok_pad), (0, 0)))
    R = (N + tok_pad) // G
    idx_g = idx_flat.reshape(R, G)
    bio_g = bio_flat.reshape(R, G * Bd)
    row_pad = 8 - R if R < 8 else 0
    if row_pad:
        idx_g = jnp.pad(idx_g, ((0, row_pad), (0, 0)))
        bio_g = jnp.pad(bio_g, ((0, row_pad), (0, 0)))
    Rw = R + row_pad

    # Tile selection: large tiles amortize the ~0.35us/step pipeline cost, but
    # keep >=2 grid steps whenever possible so ("parallel",) can split the grid
    # across v7x's two TensorCores.
    want = max(8, _round_up(max(tile_tokens // G, 1), 8))
    cap = _round_up(pl.cdiv(Rw, 2), 8) if Rw > 8 else 8
    tile_r = min(want, cap)
    grid = (pl.cdiv(Rw, tile_r),)   # ragged final block handled by Pallas

    kernel = functools.partial(_seq_embed_kernel, v_pad=folded["v_pad"],
                               bd=Bd, grp_n=G, d=D)

    out = pl.pallas_call(
        kernel,
        out_shape=jax.ShapeDtypeStruct((Rw, G * D), out_dtype),
        grid=grid,
        in_specs=[
            pl.BlockSpec((tile_r, G), lambda i: (i, 0)),               # aa indices
            pl.BlockSpec((tile_r, G * Bd), lambda i: (i, 0)),          # biochem feats
            pl.BlockSpec(folded["w_packed"].shape, lambda i: (0, 0)),  # folded weights
            pl.BlockSpec(folded["cgb"].shape, lambda i: (0, 0)),       # c / gamma / beta
        ],
        out_specs=pl.BlockSpec((tile_r, G * D), lambda i: (i, 0)),
        compiler_params=pltpu.CompilerParams(
            dimension_semantics=("parallel",)),
        # NOTE: default scoped VMEM is plenty for tile_tokens <= ~32768; raise
        # vmem_limit_bytes if tile_tokens is pushed much higher (e.g. on v7x).
    )(idx_g, bio_g, folded["w_packed"], folded["cgb"])

    emb = out.reshape(Rw * G, D)        # free: (Rw, G*D) row-major == (Rw*G, D)
    if Rw * G != N:
        emb = emb[:N]
    return emb.reshape(B, S, D)


# --------------------------------------------------------------------------- #
# Torch-equivalent parameters + pure-JAX reference
# --------------------------------------------------------------------------- #
def init_params(key, vocab_size, embedding_dim, biochem_dim, padding_idx):
    ks = jax.random.split(key, 6)
    emb = jax.random.normal(ks[0], (vocab_size, embedding_dim), jnp.float32)
    emb = emb.at[padding_idx].set(0.0)           # nn.Embedding zeros padding_idx row
    # biochem_proj: torch weight (D, biochem_dim) -> store transposed (biochem_dim, D)
    wb = jax.random.normal(ks[1], (biochem_dim, embedding_dim), jnp.float32) * 0.1
    bb = jax.random.normal(ks[2], (1, embedding_dim), jnp.float32) * 0.1
    # fusion_layer: torch weight (D, 2D) -> split & transpose into two (D, D) blocks
    wf = jax.random.normal(ks[3], (embedding_dim, 2 * embedding_dim), jnp.float32) * 0.1
    wf1 = wf[:, :embedding_dim].T                # applied to aa_embed
    wf2 = wf[:, embedding_dim:].T                # applied to biochem_embed
    bf = jax.random.normal(ks[4], (1, embedding_dim), jnp.float32) * 0.1
    gamma = jnp.ones((1, embedding_dim), jnp.float32)
    beta = jnp.zeros((1, embedding_dim), jnp.float32)
    return dict(emb_table=emb, wb=wb, bb=bb, wf1=wf1, wf2=wf2, bf=bf,
                gamma=gamma, beta=beta)


def reference(aa_indices, biochem, p):
    """Pure-JAX reference matching the PyTorch forward (eval mode), unfolded."""
    hp = lax.Precision.HIGHEST
    aa = p["emb_table"][aa_indices]                                   # (B, S, D)
    bio = jnp.dot(biochem, p["wb"], precision=hp) + p["bb"][0]
    fused = (jnp.dot(aa, p["wf1"], precision=hp)
             + jnp.dot(bio, p["wf2"], precision=hp) + p["bf"][0])
    mean = fused.mean(-1, keepdims=True)
    var = ((fused - mean) ** 2).mean(-1, keepdims=True)
    return (fused - mean) / jnp.sqrt(var + LN_EPS) * p["gamma"][0] + p["beta"][0]


if __name__ == "__main__":
    VOCAB, D, BIOCHEM, PAD_IDX = 21, 32, 5, 20
    B, S = 2, 8

    key = jax.random.PRNGKey(0)
    k_idx, k_bio, k_par = jax.random.split(key, 3)

    aa_indices = jax.random.randint(k_idx, (B, S), 0, VOCAB, dtype=jnp.int32)
    biochem = jax.random.normal(k_bio, (B, S, BIOCHEM), jnp.float32)
    params = init_params(k_par, VOCAB, D, BIOCHEM, PAD_IDX)
    folded = fold_params(params)

    out = sequence_embedding(aa_indices, biochem, folded)
    out = jax.block_until_ready(out)

    ref = reference(aa_indices, biochem, params)
    assert out.shape == (B, S, D)
    assert jnp.allclose(out, ref, atol=2e-3, rtol=2e-3), "mismatch vs reference"

    print("KERNEL_OK")
</pallas_src>

<mosaic_0001>
module attributes {stable_mosaic.version = 11 : i64} {
  func.func @_seq_embed_kernel(%arg0: i32, %arg1: memref<8x4xi32, #tpu.memory_space<vmem>>, %arg2: memref<8x20xf32, #tpu.memory_space<vmem>>, %arg3: memref<116x128xf32, #tpu.memory_space<vmem>>, %arg4: memref<3x128xf32, #tpu.memory_space<vmem>>, %arg5: memref<8x128xf32, #tpu.memory_space<vmem>>) attributes {dimension_semantics = [#tpu.dimension_semantics<parallel>], iteration_bounds = array<i64: 1>, scalar_prefetch = 0 : i64, scratch_operands = 0 : i64, tpu.core_type = #tpu.core_type<tc>, window_params = [{transform_indices = @transform_0, window_bounds = array<i64: 8, 4>}, {transform_indices = @transform_1, window_bounds = array<i64: 8, 20>}, {pipeline_mode = #tpu.pipeline_mode<synchronous>, transform_indices = @transform_2, window_bounds = array<i64: 116, 128>}, {pipeline_mode = #tpu.pipeline_mode<synchronous>, transform_indices = @transform_3, window_bounds = array<i64: 3, 128>}, {transform_indices = @transform_4, window_bounds = array<i64: 8, 128>}]} {
    %0 = tpu.iota {dimensions = array<i32: 1>} : vector<8x96xi32>
    %c0 = arith.constant 0 : index
    %c0_0 = arith.constant 0 : index
    %1 = vector.load %arg1[%c0, %c0_0] : memref<8x4xi32, #tpu.memory_space<vmem>>, vector<8x4xi32>
    %2 = vector.extract_strided_slice %1 {offsets = [0, 0], sizes = [8, 1], strides = [1, 1]} : vector<8x4xi32> to vector<8x1xi32>
    %c0_i32 = arith.constant 0 : i32
    %3 = vector.broadcast %c0_i32 : i32 to vector<8x1xi32>
    %4 = arith.addi %2, %3 : vector<8x1xi32>
    %5 = vector.broadcast %4 : vector<8x1xi32> to vector<8x96xi32>
    %6 = arith.cmpi eq, %0, %5 : vector<8x96xi32>
    %7 = vector.extract_strided_slice %1 {offsets = [0, 1], sizes = [8, 1], strides = [1, 1]} : vector<8x4xi32> to vector<8x1xi32>
    %c24_i32 = arith.constant 24 : i32
    %8 = vector.broadcast %c24_i32 : i32 to vector<8x1xi32>
    %9 = arith.addi %7, %8 : vector<8x1xi32>
    %10 = vector.broadcast %9 : vector<8x1xi32> to vector<8x96xi32>
    %11 = arith.cmpi eq, %0, %10 : vector<8x96xi32>
    %12 = arith.ori %6, %11 : vector<8x96xi1>
    %13 = vector.extract_strided_slice %1 {offsets = [0, 2], sizes = [8, 1], strides = [1, 1]} : vector<8x4xi32> to vector<8x1xi32>
    %c48_i32 = arith.constant 48 : i32
    %14 = vector.broadcast %c48_i32 : i32 to vector<8x1xi32>
    %15 = arith.addi %13, %14 : vector<8x1xi32>
    %16 = vector.broadcast %15 : vector<8x1xi32> to vector<8x96xi32>
    %17 = arith.cmpi eq, %0, %16 : vector<8x96xi32>
    %18 = arith.ori %12, %17 : vector<8x96xi1>
    %19 = vector.extract_strided_slice %1 {offsets = [0, 3], sizes = [8, 1], strides = [1, 1]} : vector<8x4xi32> to vector<8x1xi32>
    %c72_i32 = arith.constant 72 : i32
    %20 = vector.broadcast %c72_i32 : i32 to vector<8x1xi32>
    %21 = arith.addi %19, %20 : vector<8x1xi32>
    %22 = vector.broadcast %21 : vector<8x1xi32> to vector<8x96xi32>
    %23 = arith.cmpi eq, %0, %22 : vector<8x96xi32>
    %24 = arith.ori %18, %23 : vector<8x96xi1>
    %25 = arith.extui %24 : vector<8x96xi1> to vector<8x96xi32>
    %26 = arith.sitofp %25 : vector<8x96xi32> to vector<8x96xf32>
    %c0_1 = arith.constant 0 : index
    %c0_2 = arith.constant 0 : index
    %27 = vector.load %arg3[%c0_1, %c0_2] : memref<116x128xf32, #tpu.memory_space<vmem>>, vector<96x128xf32>
    %cst = arith.constant dense<0.000000e+00> : vector<8x128xf32>
    %28 = tpu.matmul %26, %27, %cst {dimension_numbers = #tpu.dot_dimension_numbers<[1], [0], [0], [1], [0, 0, 1, 1], [], []>} : vector<8x96xf32>, vector<96x128xf32>, vector<8x128xf32> -> vector<8x128xf32>
    %c0_3 = arith.constant 0 : index
    %c0_4 = arith.constant 0 : index
    %29 = vector.load %arg2[%c0_3, %c0_4] : memref<8x20xf32, #tpu.memory_space<vmem>>, vector<8x20xf32>
    %c96 = arith.constant 96 : index
    %c0_5 = arith.constant 0 : index
    %30 = vector.load %arg3[%c96, %c0_5] : memref<116x128xf32, #tpu.memory_space<vmem>>, vector<20x128xf32>
    %cst_6 = arith.constant dense<0.000000e+00> : vector<8x128xf32>
    %31 = tpu.matmul %29, %30, %cst_6 {dimension_numbers = #tpu.dot_dimension_numbers<[1], [0], [0], [1], [0, 0, 1, 1], [], []>} : vector<8x20xf32>, vector<20x128xf32>, vector<8x128xf32> -> vector<8x128xf32>
    %32 = arith.addf %28, %31 : vector<8x128xf32>
    %c0_7 = arith.constant 0 : index
    %c0_8 = arith.constant 0 : index
    %33 = vector.load %arg4[%c0_7, %c0_8] : memref<3x128xf32, #tpu.memory_space<vmem>>, vector<1x128xf32>
    %34 = vector.broadcast %33 : vector<1x128xf32> to vector<8x128xf32>
    %35 = arith.addf %32, %34 : vector<8x128xf32>
    %36 = tpu.iota {dimensions = array<i32: 1>} : vector<1x128xi32>
    %37 = vector.extract_strided_slice %35 {offsets = [0, 0], sizes = [8, 32], strides = [1, 1]} : vector<8x128xf32> to vector<8x32xf32>
    %cst_9 = arith.constant dense<0.000000e+00> : vector<8xf32>
    %38 = vector.multi_reduction <add>, %37, %cst_9 [1] : vector<8x32xf32> to vector<8xf32>
    %39 = vector.shape_cast %38 : vector<8xf32> to vector<8x1xf32>
    %cst_10 = arith.constant 3.200000e+01 : f32
    %40 = vector.broadcast %cst_10 : f32 to vector<8x1xf32>
    %41 = arith.divf %39, %40 : vector<8x1xf32>
    %42 = vector.broadcast %41 : vector<8x1xf32> to vector<8x32xf32>
    %43 = arith.subf %37, %42 : vector<8x32xf32>
    %44 = arith.mulf %43, %43 : vector<8x32xf32>
    %cst_11 = arith.constant dense<0.000000e+00> : vector<8xf32>
    %45 = vector.multi_reduction <add>, %44, %cst_11 [1] : vector<8x32xf32> to vector<8xf32>
    %46 = vector.shape_cast %45 : vector<8xf32> to vector<8x1xf32>
    %cst_12 = arith.constant 3.200000e+01 : f32
    %47 = vector.broadcast %cst_12 : f32 to vector<8x1xf32>
    %48 = arith.divf %46, %47 : vector<8x1xf32>
    %49 = vector.extract_strided_slice %35 {offsets = [0, 32], sizes = [8, 32], strides = [1, 1]} : vector<8x128xf32> to vector<8x32xf32>
    %cst_13 = arith.constant dense<0.000000e+00> : vector<8xf32>
    %50 = vector.multi_reduction <add>, %49, %cst_13 [1] : vector<8x32xf32> to vector<8xf32>
    %51 = vector.shape_cast %50 : vector<8xf32> to vector<8x1xf32>
    %cst_14 = arith.constant 3.200000e+01 : f32
    %52 = vector.broadcast %cst_14 : f32 to vector<8x1xf32>
    %53 = arith.divf %51, %52 : vector<8x1xf32>
    %54 = vector.broadcast %53 : vector<8x1xf32> to vector<8x32xf32>
    %55 = arith.subf %49, %54 : vector<8x32xf32>
    %56 = arith.mulf %55, %55 : vector<8x32xf32>
    %cst_15 = arith.constant dense<0.000000e+00> : vector<8xf32>
    %57 = vector.multi_reduction <add>, %56, %cst_15 [1] : vector<8x32xf32> to vector<8xf32>
    %58 = vector.shape_cast %57 : vector<8xf32> to vector<8x1xf32>
    %cst_16 = arith.constant 3.200000e+01 : f32
    %59 = vector.broadcast %cst_16 : f32 to vector<8x1xf32>
    %60 = arith.divf %58, %59 : vector<8x1xf32>
    %c32_i32 = arith.constant 32 : i32
    %61 = vector.broadcast %c32_i32 : i32 to vector<1x128xi32>
    %62 = arith.cmpi sge, %36, %61 : vector<1x128xi32>
    %63 = vector.shape_cast %62 : vector<1x128xi1> to vector<1x128xi1>
    %64 = vector.broadcast %63 : vector<1x128xi1> to vector<8x128xi1>
    %65 = vector.shape_cast %53 : vector<8x1xf32> to vector<8x1xf32>
    %66 = vector.broadcast %65 : vector<8x1xf32> to vector<8x128xf32>
    %67 = vector.shape_cast %41 : vector<8x1xf32> to vector<8x1xf32>
    %68 = vector.broadcast %67 : vector<8x1xf32> to vector<8x128xf32>
    %69 = arith.select %64, %66, %68 : vector<8x128xi1>, vector<8x128xf32>
    %70 = vector.shape_cast %62 : vector<1x128xi1> to vector<1x128xi1>
    %71 = vector.broadcast %70 : vector<1x128xi1> to vector<8x128xi1>
    %72 = vector.shape_cast %60 : vector<8x1xf32> to vector<8x1xf32>
    %73 = vector.broadcast %72 : vector<8x1xf32> to vector<8x128xf32>
    %74 = vector.shape_cast %48 : vector<8x1xf32> to vector<8x1xf32>
    %75 = vector.broadcast %74 : vector<8x1xf32> to vector<8x128xf32>
    %76 = arith.select %71, %73, %75 : vector<8x128xi1>, vector<8x128xf32>
    %77 = vector.extract_strided_slice %35 {offsets = [0, 64], sizes = [8, 32], strides = [1, 1]} : vector<8x128xf32> to vector<8x32xf32>
    %cst_17 = arith.constant dense<0.000000e+00> : vector<8xf32>
    %78 = vector.multi_reduction <add>, %77, %cst_17 [1] : vector<8x32xf32> to vector<8xf32>
    %79 = vector.shape_cast %78 : vector<8xf32> to vector<8x1xf32>
    %cst_18 = arith.constant 3.200000e+01 : f32
    %80 = vector.broadcast %cst_18 : f32 to vector<8x1xf32>
    %81 = arith.divf %79, %80 : vector<8x1xf32>
    %82 = vector.broadcast %81 : vector<8x1xf32> to vector<8x32xf32>
    %83 = arith.subf %77, %82 : vector<8x32xf32>
    %84 = arith.mulf %83, %83 : vector<8x32xf32>
    %cst_19 = arith.constant dense<0.000000e+00> : vector<8xf32>
    %85 = vector.multi_reduction <add>, %84, %cst_19 [1] : vector<8x32xf32> to vector<8xf32>
    %86 = vector.shape_cast %85 : vector<8xf32> to vector<8x1xf32>
    %cst_20 = arith.constant 3.200000e+01 : f32
    %87 = vector.broadcast %cst_20 : f32 to vector<8x1xf32>
    %88 = arith.divf %86, %87 : vector<8x1xf32>
    %c64_i32 = arith.constant 64 : i32
    %89 = vector.broadcast %c64_i32 : i32 to vector<1x128xi32>
    %90 = arith.cmpi sge, %36, %89 : vector<1x128xi32>
    %91 = vector.shape_cast %90 : vector<1x128xi1> to vector<1x128xi1>
    %92 = vector.broadcast %91 : vector<1x128xi1> to vector<8x128xi1>
    %93 = vector.shape_cast %81 : vector<8x1xf32> to vector<8x1xf32>
    %94 = vector.broadcast %93 : vector<8x1xf32> to vector<8x128xf32>
    %95 = arith.select %92, %94, %69 : vector<8x128xi1>, vector<8x128xf32>
    %96 = vector.shape_cast %90 : vector<1x128xi1> to vector<1x128xi1>
    %97 = vector.broadcast %96 : vector<1x128xi1> to vector<8x128xi1>
    %98 = vector.shape_cast %88 : vector<8x1xf32> to vector<8x1xf32>
    %99 = vector.broadcast %98 : vector<8x1xf32> to vector<8x128xf32>
    %100 = arith.select %97, %99, %76 : vector<8x128xi1>, vector<8x128xf32>
    %101 = vector.extract_strided_slice %35 {offsets = [0, 96], sizes = [8, 32], strides = [1, 1]} : vector<8x128xf32> to vector<8x32xf32>
    %cst_21 = arith.constant dense<0.000000e+00> : vector<8xf32>
    %102 = vector.multi_reduction <add>, %101, %cst_21 [1] : vector<8x32xf32> to vector<8xf32>
    %103 = vector.shape_cast %102 : vector<8xf32> to vector<8x1xf32>
    %cst_22 = arith.constant 3.200000e+01 : f32
    %104 = vector.broadcast %cst_22 : f32 to vector<8x1xf32>
    %105 = arith.divf %103, %104 : vector<8x1xf32>
    %106 = vector.broadcast %105 : vector<8x1xf32> to vector<8x32xf32>
    %107 = arith.subf %101, %106 : vector<8x32xf32>
    %108 = arith.mulf %107, %107 : vector<8x32xf32>
    %cst_23 = arith.constant dense<0.000000e+00> : vector<8xf32>
    %109 = vector.multi_reduction <add>, %108, %cst_23 [1] : vector<8x32xf32> to vector<8xf32>
    %110 = vector.shape_cast %109 : vector<8xf32> to vector<8x1xf32>
    %cst_24 = arith.constant 3.200000e+01 : f32
    %111 = vector.broadcast %cst_24 : f32 to vector<8x1xf32>
    %112 = arith.divf %110, %111 : vector<8x1xf32>
    %c96_i32 = arith.constant 96 : i32
    %113 = vector.broadcast %c96_i32 : i32 to vector<1x128xi32>
    %114 = arith.cmpi sge, %36, %113 : vector<1x128xi32>
    %115 = vector.shape_cast %114 : vector<1x128xi1> to vector<1x128xi1>
    %116 = vector.broadcast %115 : vector<1x128xi1> to vector<8x128xi1>
    %117 = vector.shape_cast %105 : vector<8x1xf32> to vector<8x1xf32>
    %118 = vector.broadcast %117 : vector<8x1xf32> to vector<8x128xf32>
    %119 = arith.select %116, %118, %95 : vector<8x128xi1>, vector<8x128xf32>
    %120 = vector.shape_cast %114 : vector<1x128xi1> to vector<1x128xi1>
    %121 = vector.broadcast %120 : vector<1x128xi1> to vector<8x128xi1>
    %122 = vector.shape_cast %112 : vector<8x1xf32> to vector<8x1xf32>
    %123 = vector.broadcast %122 : vector<8x1xf32> to vector<8x128xf32>
    %124 = arith.select %121, %123, %100 : vector<8x128xi1>, vector<8x128xf32>
    %cst_25 = arith.constant 9.99999974E-6 : f32
    %125 = vector.broadcast %cst_25 : f32 to vector<8x128xf32>
    %126 = arith.addf %124, %125 : vector<8x128xf32>
    %127 = math.rsqrt %126 : vector<8x128xf32>
    %128 = arith.subf %35, %119 : vector<8x128xf32>
    %129 = arith.mulf %128, %127 : vector<8x128xf32>
    %c1 = arith.constant 1 : index
    %c0_26 = arith.constant 0 : index
    %130 = vector.load %arg4[%c1, %c0_26] : memref<3x128xf32, #tpu.memory_space<vmem>>, vector<1x128xf32>
    %131 = vector.broadcast %130 : vector<1x128xf32> to vector<8x128xf32>
    %132 = arith.mulf %129, %131 : vector<8x128xf32>
    %c2 = arith.constant 2 : index
    %c0_27 = arith.constant 0 : index
    %133 = vector.load %arg4[%c2, %c0_27] : memref<3x128xf32, #tpu.memory_space<vmem>>, vector<1x128xf32>
    %134 = vector.broadcast %133 : vector<1x128xf32> to vector<8x128xf32>
    %135 = arith.addf %132, %134 : vector<8x128xf32>
    %c0_28 = arith.constant 0 : index
    %c0_29 = arith.constant 0 : index
    %136 = vector.load %arg5[%c0_28, %c0_29] : memref<8x128xf32, #tpu.memory_space<vmem>>, vector<8x128xf32>
    tpu.vector_store %arg5[%c0_28, %c0_29], %135 {strides = array<i32>} : memref<8x128xf32, #tpu.memory_space<vmem>>, vector<8x128xf32>,
    return
  }
  func.func @transform_0(%arg0: i32) -> (i32, i32) {
    %c0_i32 = arith.constant 0 : i32
    %c0_i32_0 = arith.constant 0 : i32
    return %arg0, %c0_i32 : i32, i32
  }
  func.func @transform_1(%arg0: i32) -> (i32, i32) {
    %c0_i32 = arith.constant 0 : i32
    %c0_i32_0 = arith.constant 0 : i32
    return %arg0, %c0_i32 : i32, i32
  }
  func.func @transform_2(%arg0: i32) -> (i32, i32) {
    %c0_i32 = arith.constant 0 : i32
    %c0_i32_0 = arith.constant 0 : i32
    %c0_i32_1 = arith.constant 0 : i32
    return %c0_i32, %c0_i32_0 : i32, i32
  }
  func.func @transform_3(%arg0: i32) -> (i32, i32) {
    %c0_i32 = arith.constant 0 : i32
    %c0_i32_0 = arith.constant 0 : i32
    %c0_i32_1 = arith.constant 0 : i32
    return %c0_i32, %c0_i32_0 : i32, i32
  }
  func.func @transform_4(%arg0: i32) -> (i32, i32) {
    %c0_i32 = arith.constant 0 : i32
    %c0_i32_0 = arith.constant 0 : i32
    return %arg0, %c0_i32 : i32, i32
  }
}

</mosaic_0001>

<llo_original>
// kernel: tpu_custom_call.1
$region0: #{tpu_custom_call.1}
  #allocation0 [shape = 'u32[]', space=smem, size = 0x4, offset = 0x4, fixed_abs, tag = 'smem constant byte address 0x4 - core index']
  #allocation1 [shape = 'u32[144,128]{1,0:T(1,128)}', space=vmem, size = 0x12000, scoped, tag = 'internal scratch']
  %s0 = inlined_call_operand.vmem [shape: s32[8,4], index: 0, kind: input, shape index: {}]
  %s1 = inlined_call_operand.vmem [shape: f32[8,20], index: 1, kind: input, shape index: {}]
  %s2 = inlined_call_operand.hbm [shape: f32[116,128], index: 2, kind: input, shape index: {}]
  %s3 = inlined_call_operand.vmem [shape: f32[3,128], index: 3, kind: input, shape index: {}]
  %s4 = inlined_call_operand.hbm [shape: f32[8,128], index: 4, kind: output, shape index: {}]
  %s5 = sld [smem:[#allocation0]]
  $region30: #{tpu_custom_call.1} parent=0
    _
  %s7 = ssub.s32 1, %s5
  %s8 = scalar_select 0, %s7, %s5
  $region1: #{tpu_custom_call.1} parent=0
    #allocation2 [shape = 'u8[61440]{0}', space=vmem, size = 0xf000, scoped, tag = 'input window, operand 2, single buffered']
    #allocation3 [shape = 's32[1]{0}', space=sflag, size = 0x4, scoped, tag = 'scoped memory for tpu_custom_call.1']
    #allocation4 [shape = 's32[1]{0}', space=sflag, size = 0x4, scoped, tag = 'scoped memory for tpu_custom_call.1']
    #allocation5 [shape = 'u8[4096]{0}', space=vmem, size = 0x1000, scoped, tag = 'output window, operand 0, single buffered']
    %9 = vsyncpa [#allocation3], 0
    %10 = vsyncpa [#allocation4], 0
    // Predicated region
    $region2: #{tpu_custom_call.1} parent=1 // pred_check
      _
    $region3: #{tpu_custom_call.1} parent=1 // pred_check_branch
      %12 = sbr.rel (0) target = $region5
    $region4: #{tpu_custom_call.1} parent=1 // pred_region
      _
    $region5: #{tpu_custom_call.1} parent=1 // pred_fallthru
      _
    // Predicated region
    $region6: #{tpu_custom_call.1} parent=1 // pred_check
      _
    $region7: #{tpu_custom_call.1} parent=1 // pred_check_branch
      %14 = sbr.rel (0) target = $region9
    $region8: #{tpu_custom_call.1} parent=1 // pred_region
      _
    $region9: #{tpu_custom_call.1} parent=1 // pred_fallthru
      _
    // Predicated region
    $region10: #{tpu_custom_call.1} parent=1 // pred_check
      _
    $region11: #{tpu_custom_call.1} parent=1 // pred_check_branch
      %16 = sbr.rel (0) target = $region13
    $region12: #{tpu_custom_call.1} parent=1 // pred_region
      %s18 = ssub.s32 1920, 1920
      %19 = vsyncadd [#allocation3], %s18
      %s20 = sshll.u32 [#allocation2], 4
      %s21 = int_to_ptr.vmem [resolvable:$true] %s20
      %26 = dma.hbm_to_vmem [thread:$0]  %s2, 1920, %s21, [#allocation3], 128, 128, 8
    $region13: #{tpu_custom_call.1} parent=1 // pred_fallthru
      _
    // Predicated region
    $region14: #{tpu_custom_call.1} parent=1 // pred_check
      _
    $region15: #{tpu_custom_call.1} parent=1 // pred_check_branch
      %28 = sbr.rel (0) target = $region17
    $region16: #{tpu_custom_call.1} parent=1 // pred_region
      _
    $region17: #{tpu_custom_call.1} parent=1 // pred_fallthru
      _
    // Predicated region
    $region18: #{tpu_custom_call.1} parent=1 // pred_check
      _
    $region19: #{tpu_custom_call.1} parent=1 // pred_check_branch
      %30 = sbr.rel (0) target = $region21
    $region20: #{tpu_custom_call.1} parent=1 // pred_region
      %31 = dma.done [#allocation3], 1920
    $region21: #{tpu_custom_call.1} parent=1 // pred_fallthru
      _
    %v32 = vlaneseq
    %v33 = vand.u32 %v32, 127
    %v34 = vld [vmem:[%s0] sm:$0xff]
    %35 = vset.pattern.permute.xlu0 0
    %36 = vperm.xlu0 %35, %v34
    %v37 = vpop.permute.xlu0 %36
    %vm38 = vcmp.eq.s32.totalorder %v33, %v37
    %v39 = vadd.s32 %v34, 24
    %40 = vset.pattern.permute.xlu0 1
    %41 = vperm.xlu0 %40, %v39
    %v42 = vpop.permute.xlu0 %41
    %vm43 = vcmp.eq.s32.totalorder %v33, %v42
    %vm44 = vmor %vm38, %vm43
    %v45 = vadd.s32 %v34, 48
    %46 = vset.pattern.permute.xlu0 2
    %47 = vperm.xlu0 %46, %v45
    %v48 = vpop.permute.xlu0 %47
    %vm49 = vcmp.eq.s32.totalorder %v33, %v48
    %vm50 = vmor %vm44, %vm49
    %v51 = vadd.s32 %v34, 72
    %52 = vset.pattern.permute.xlu0 3
    %53 = vperm.xlu0 %52, %v51
    %v54 = vpop.permute.xlu0 %53
    %vm55 = vcmp.eq.s32.totalorder %v33, %v54
    %vm56 = vmor %vm50, %vm55
    %v57 = vsel %vm56, 1, 0
    %v58 = vcvt.s32.f32 %v57
    %v59 = vld [vmem:[#allocation2] sm:$0xff]
    %v60 = vld [vmem:[#allocation2 + $0x8] sm:$0xff]
    %v61 = vld [vmem:[#allocation2 + $0x10] sm:$0xff]
    %v62 = vld [vmem:[#allocation2 + $0x18] sm:$0xff]
    %v63 = vld [vmem:[#allocation2 + $0x20] sm:$0xff]
    %v64 = vld [vmem:[#allocation2 + $0x28] sm:$0xff]
    %v65 = vld [vmem:[#allocation2 + $0x30] sm:$0xff]
    %v66 = vld [vmem:[#allocation2 + $0x38] sm:$0xff]
    %v67 = vld [vmem:[#allocation2 + $0x40] sm:$0xff]
    %v68 = vld [vmem:[#allocation2 + $0x48] sm:$0xff]
    %v69 = vld [vmem:[#allocation2 + $0x50] sm:$0xff]
    %v70 = vld [vmem:[#allocation2 + $0x58] sm:$0xff]
    %v71 = vld [vmem:[%s1] sm:$0xff]
    %v72 = vld [vmem:[#allocation2 + $0x60] sm:$0xff]
    %v73 = vld [vmem:[#allocation2 + $0x68] sm:$0xff]
    %v74 = vld [vmem:[#allocation2 + $0x70] sm:$0xf]
    %vm75 = vcmask 162816
    %v77 = vsel %vm75, %v71, 0
    %vm79 = vcmask 1043456
    %v81 = vsel %vm79, %v74, 0
    %83 = vmatprep.subr.mxu0 0.0
    %84 = vmatpush1.msra.mxu0 %v72
    %85 = vmatprep.subr.mxu0 0.0
    %86 = vmatpush1.msra.mxu0 %v73
    %87 = vmatprep.subr.mxu0 0.0
    %88 = vmatpush1.msra.mxu0 %v81
    %89 = vmatprep.subr.mxu0 0.0
    %90 = vmatpush1.msra.mxu0 0.0
    %91 = vmatprep.subr.mxu0 0.0
    %92 = vmatpush1.msra.mxu0 0.0
    %93 = vmatprep.subr.mxu0 0.0
    %94 = vmatpush1.msra.mxu0 0.0
    %95 = vmatprep.subr.mxu0 0.0
    %96 = vmatpush1.msra.mxu0 0.0
    %97 = vmatprep.subr.mxu0 0.0
    %98 = vmatpush1.msra.mxu0 0.0
    %99 = vmatprep.subr.mxu0 0.0
    %100 = vmatpush1.msra.mxu0 0.0
    %101 = vmatprep.subr.mxu0 0.0
    %102 = vmatpush1.msra.mxu0 0.0
    %103 = vmatprep.subr.mxu0 0.0
    %104 = vmatpush1.msra.mxu0 0.0
    %105 = vmatprep.subr.mxu0 0.0
    %106 = vmatpush1.msra.mxu0 0.0
    %107 = vmatprep.subr.mxu0 0.0
    %108 = vmatpush1.msra.mxu0 0.0
    %109 = vmatprep.subr.mxu0 0.0
    %110 = vmatpush1.msra.mxu0 0.0
    %111 = vmatprep.subr.mxu0 0.0
    %112 = vmatpush1.msra.mxu0 0.0
    %113 = vmatprep.subr.mxu0 0.0
    %114 = vmatpush1.msra.mxu0 0.0
    %115 = vmatprep.subr.mxu0 0.0
    %116 = vmatpush1.msra.mxu0 0.0
    %117 = vmatprep.subr.mxu0 0.0
    %118 = vmatpush1.msra.mxu0 0.0
    %119 = vmatprep.subr.mxu0 0.0
    %120 = vmatpush1.msra.mxu0 0.0
    %121 = vmatprep.subr.mxu0 0.0
    %122 = vmatpush1.msra.mxu0 0.0
    %123 = vmatprep.subr.mxu0 0.0
    %124 = vmatpush1.msra.mxu0 0.0
    %125 = vmatprep.subr.mxu0 0.0
    %126 = vmatpush1.msra.mxu0 0.0
    %127 = vmatprep.subr.mxu0 0.0
    %128 = vmatpush1.msra.mxu0 0.0
    %129 = vmatprep.subr.mxu0 0.0
    %130 = vmatpush1.msra.mxu0 0.0
    %131 = vmatprep.subr.mxu0 0.0
    %132 = vmatpush1.msra.mxu0 0.0
    %133 = vmatprep.subr.mxu0 0.0
    %134 = vmatpush1.msra.mxu0 0.0
    %135 = vmatprep.subr.mxu0 0.0
    %136 = vmatpush1.msra.mxu0 0.0
    %137 = vmatprep.subr.mxu0 0.0
    %138 = vmatpush1.msra.mxu0 0.0
    %139 = vmatprep.subr.mxu0 0.0
    %140 = vmatpush1.msra.mxu0 0.0
    %141 = vmatprep.subr.mxu0 0.0
    %142 = vmatpush1.msra.mxu0 0.0
    %143 = vmatprep.subr.mxu0 0.0
    %144 = vmatpush1.msra.mxu0 0.0
    %145 = vmatprep.subr.mxu0 0.0
    %146 = vmatpush1.msra.mxu0 0.0
    %147 = vmatprep.mubr.f32.mxu0 0.0
    %148 = vmatmul.mubr.f32.gmra.mrb[0].mxu0 %v77
    %v149 = vpop.f32.mrb[0].mxu0
    %v150 = vadd.f32 0.0, %v149
    %v151 = vpop.f32.mrb[0].mxu0
    %152 = vdwg.mxu0
    %vm153 = vcmask 785408
    %v155 = vsel %vm153, %v58, 0
    %157 = vmatprep.subr.mxu0 0.0
    %158 = vmatpush1.msra.mxu0 %v59
    %159 = vmatprep.subr.mxu0 0.0
    %160 = vmatpush1.msra.mxu0 %v60
    %161 = vmatprep.subr.mxu0 0.0
    %162 = vmatpush1.msra.mxu0 %v61
    %163 = vmatprep.subr.mxu0 0.0
    %164 = vmatpush1.msra.mxu0 %v62
    %165 = vmatprep.subr.mxu0 0.0
    %166 = vmatpush1.msra.mxu0 %v63
    %167 = vmatprep.subr.mxu0 0.0
    %168 = vmatpush1.msra.mxu0 %v64
    %169 = vmatprep.subr.mxu0 0.0
    %170 = vmatpush1.msra.mxu0 %v65
    %171 = vmatprep.subr.mxu0 0.0
    %172 = vmatpush1.msra.mxu0 %v66
    %173 = vmatprep.subr.mxu0 0.0
    %174 = vmatpush1.msra.mxu0 %v67
    %175 = vmatprep.subr.mxu0 0.0
    %176 = vmatpush1.msra.mxu0 %v68
    %177 = vmatprep.subr.mxu0 0.0
    %178 = vmatpush1.msra.mxu0 %v69
    %179 = vmatprep.subr.mxu0 0.0
    %180 = vmatpush1.msra.mxu0 %v70
    %181 = vmatprep.subr.mxu0 0.0
    %182 = vmatpush1.msra.mxu0 0.0
    %183 = vmatprep.subr.mxu0 0.0
    %184 = vmatpush1.msra.mxu0 0.0
    %185 = vmatprep.subr.mxu0 0.0
    %186 = vmatpush1.msra.mxu0 0.0
    %187 = vmatprep.subr.mxu0 0.0
    %188 = vmatpush1.msra.mxu0 0.0
    %189 = vmatprep.subr.mxu0 0.0
    %190 = vmatpush1.msra.mxu0 0.0
    %191 = vmatprep.subr.mxu0 0.0
    %192 = vmatpush1.msra.mxu0 0.0
    %193 = vmatprep.subr.mxu0 0.0
    %194 = vmatpush1.msra.mxu0 0.0
    %195 = vmatprep.subr.mxu0 0.0
    %196 = vmatpush1.msra.mxu0 0.0
    %197 = vmatprep.subr.mxu0 0.0
    %198 = vmatpush1.msra.mxu0 0.0
    %199 = vmatprep.subr.mxu0 0.0
    %200 = vmatpush1.msra.mxu0 0.0
    %201 = vmatprep.subr.mxu0 0.0
    %202 = vmatpush1.msra.mxu0 0.0
    %203 = vmatprep.subr.mxu0 0.0
    %204 = vmatpush1.msra.mxu0 0.0
    %205 = vmatprep.subr.mxu0 0.0
    %206 = vmatpush1.msra.mxu0 0.0
    %207 = vmatprep.subr.mxu0 0.0
    %208 = vmatpush1.msra.mxu0 0.0
    %209 = vmatprep.subr.mxu0 0.0
    %210 = vmatpush1.msra.mxu0 0.0
    %211 = vmatprep.subr.mxu0 0.0
    %212 = vmatpush1.msra.mxu0 0.0
    %213 = vmatprep.subr.mxu0 0.0
    %214 = vmatpush1.msra.mxu0 0.0
    %215 = vmatprep.subr.mxu0 0.0
    %216 = vmatpush1.msra.mxu0 0.0
    %217 = vmatprep.subr.mxu0 0.0
    %218 = vmatpush1.msra.mxu0 0.0
    %219 = vmatprep.subr.mxu0 0.0
    %220 = vmatpush1.msra.mxu0 0.0
    %221 = vmatprep.mubr.f32.mxu0 0.0
    %222 = vmatmul.mubr.f32.gmra.mrb[0].mxu0 %v155
    %v223 = vpop.f32.mrb[0].mxu0
    %v224 = vadd.f32 %v150, %v223
    %v225 = vpop.f32.mrb[0].mxu0
    %226 = vdwg.mxu0
    %v227 = vld [vmem:[%s3] sm:$0x1]
    %v228 = vlaneseq
    %v229 = vshrl.u32 %v228, 7
    %v230 = vsub.s32 0, %v229
    %v231 = vrot.slane %v227, %v230
    %v232 = vadd.f32 %v224, %v231
    %vm233 = vcmask 261120
    %v234 = vsel %vm233, %v232, 0.0
    %235 = vadd.xlane.f32.xlu0 %v234
    %v236 = vpop.xlane.xlu0 %235
    %v237 = vrcp.pop 32.0
    %v238 = vmul.f32 %v236, %v237
    %v239 = vsub.f32 %v232, %v238
    %v240 = vmul.f32 %v239, %v239
    %v241 = vsel %vm233, %v240, 0.0
    %242 = vadd.xlane.f32.xlu0 %v241
    %v243 = vpop.xlane.xlu0 %242
    %v244 = vmul.f32 %v243, %v237
    %246 = vrot.lane.b32.xlu0 %v232, 96
    %v247 = vpop.permute.xlu0 %246
    %v249 = vsel %vm233, %v247, 0.0
    %250 = vadd.xlane.f32.xlu0 %v249
    %v251 = vpop.xlane.xlu0 %250
    %v252 = vmul.f32 %v251, %v237
    %v253 = vsub.f32 %v232, %v252
    %v254 = vmul.f32 %v253, %v253
    %256 = vrot.lane.b32.xlu0 %v254, 96
    %v257 = vpop.permute.xlu0 %256
    %v259 = vsel %vm233, %v257, 0.0
    %260 = vadd.xlane.f32.xlu0 %v259
    %v261 = vpop.xlane.xlu0 %260
    %v262 = vmul.f32 %v261, %v237
    %vm263 = vcmp.ge.s32.totalorder %v33, 32
    %v264 = vsel %vm263, 1, 0
    %vm265 = vcmp.eq.s32.totalorder %v264, 1
    %v266 = vsel %vm265, %v252, %v238
    %v267 = vsel %vm265, %v262, %v244
    %268 = vrot.lane.b32.xlu0 %v232, 64
    %v269 = vpop.permute.xlu0 %268
    %v271 = vsel %vm233, %v269, 0.0
    %272 = vadd.xlane.f32.xlu0 %v271
    %v273 = vpop.xlane.xlu0 %272
    %v274 = vmul.f32 %v273, %v237
    %v275 = vsub.f32 %v232, %v274
    %v276 = vmul.f32 %v275, %v275
    %278 = vrot.lane.b32.xlu0 %v276, 64
    %v279 = vpop.permute.xlu0 %278
    %v281 = vsel %vm233, %v279, 0.0
    %282 = vadd.xlane.f32.xlu0 %v281
    %v283 = vpop.xlane.xlu0 %282
    %v284 = vmul.f32 %v283, %v237
    %vm285 = vcmp.ge.s32.totalorder %v33, 64
    %v286 = vsel %vm285, 1, 0
    %vm287 = vcmp.eq.s32.totalorder %v286, 1
    %v288 = vsel %vm287, %v274, %v266
    %v289 = vsel %vm287, %v284, %v267
    %290 = vrot.lane.b32.xlu0 %v232, 32
    %v291 = vpop.permute.xlu0 %290
    %v293 = vsel %vm233, %v291, 0.0
    %294 = vadd.xlane.f32.xlu0 %v293
    %v295 = vpop.xlane.xlu0 %294
    %v296 = vmul.f32 %v295, %v237
    %v297 = vsub.f32 %v232, %v296
    %v298 = vmul.f32 %v297, %v297
    %300 = vrot.lane.b32.xlu0 %v298, 32
    %v301 = vpop.permute.xlu0 %300
    %v303 = vsel %vm233, %v301, 0.0
    %304 = vadd.xlane.f32.xlu0 %v303
    %v305 = vpop.xlane.xlu0 %304
    %v306 = vmul.f32 %v305, %v237
    %vm307 = vcmp.ge.s32.totalorder %v33, 96
    %v308 = vsel %vm307, 1, 0
    %vm309 = vcmp.eq.s32.totalorder %v308, 1
    %v310 = vsel %vm309, %v296, %v288
    %v311 = vsel %vm309, %v306, %v289
    %v312 = vadd.f32 %v311, 1e-05
    %v313 = vrsqrt.pop %v312
    %v314 = vsub.f32 %v232, %v310
    %v315 = vmul.f32 %v314, %v313
    %v316 = vld [vmem:[%s3 + $0x1] sm:$0x1]
    %v317 = vlaneseq
    %v318 = vshrl.u32 %v317, 7
    %v319 = vsub.s32 0, %v318
    %v320 = vrot.slane %v316, %v319
    %v321 = vmul.f32 %v315, %v320
    %v322 = vld [vmem:[%s3 + $0x2] sm:$0x1]
    %v323 = vlaneseq
    %v324 = vshrl.u32 %v323, 7
    %v325 = vsub.s32 0, %v324
    %v326 = vrot.slane %v322, %v325
    %v327 = vadd.f32 %v321, %v326
    %328 = vst [vmem:[#allocation5] sm:$0xff] %v327
    // Predicated region
    $region22: #{tpu_custom_call.1} parent=1 // pred_check
      _
    $region23: #{tpu_custom_call.1} parent=1 // pred_check_branch
      %330 = sbr.rel (0) target = $region25
    $region24: #{tpu_custom_call.1} parent=1 // pred_region
      %s332 = ssub.s32 128, 128
      %333 = vsyncadd [#allocation4], %s332
      %s335 = sshll.u32 [#allocation5], 4
      %s336 = int_to_ptr.vmem [resolvable:$true] %s335
      %338 = dma.vmem_to_hbm [thread:$0]  %s336, 128, %s4, [#allocation4]
    $region25: #{tpu_custom_call.1} parent=1 // pred_fallthru
      _
    // Predicated region
    $region26: #{tpu_custom_call.1} parent=1 // pred_check
      _
    $region27: #{tpu_custom_call.1} parent=1 // pred_check_branch
      %340 = sbr.rel (0) target = $region29
    $region28: #{tpu_custom_call.1} parent=1 // pred_region
      %341 = dma.done [#allocation4], 128
    $region29: #{tpu_custom_call.1} parent=1 // pred_fallthru
      _
    %342 = vsyncpa [#allocation3], 1
    %343 = vsyncpa [#allocation4], 1

</llo_original>
